<compile_context>
chip_gen: v5e
topology: v5e:2x2
jax: 0.10.0
libtpu: 0.0.40
codegen_flags: <defaults>
</compile_context>

<pallas_src>
import functools

import jax
import jax.numpy as jnp
from jax.experimental import pallas as pl
from jax.experimental.pallas import tpu as pltpu

NEG_BIG = -9e15


def _leaky_relu(x, alpha):
    return jnp.where(x > 0, x, alpha * x)


def _elu(x):
    return jnp.where(x > 0, x, jnp.exp(x) - 1.0)


def _masked_softmax(e, mask):
    e = jnp.where(mask, e, NEG_BIG)
    e = e - jnp.max(e, axis=-1, keepdims=True)
    p = jnp.exp(e)
    inv = pl.reciprocal(jnp.sum(p, axis=-1, keepdims=True), approx=False)
    return p * inv


def gat_fused_kernel(x_ref, adj_ref, wcat_ref, a1_ref, a2_ref, wout_ref, aout_ref,
                     o_ref, *, alpha, nheads, nhid):
    # x_ref: (1,N,F)  adj_ref: (1,N,N)  wcat_ref: (F,H*Fo)
    # a1_ref/a2_ref: (H, H*Fo) block-diagonal attention vectors
    # wout_ref: (H*Fo, nclass)  aout_ref: (2, nclass)  o_ref: (1,1,nclass)
    x = x_ref[0]                                        # (N, F)
    mask = adj_ref[0] > 0                               # (N, N)

    # ---- all heads projected with a single MXU matmul ----
    h_all = jnp.dot(x, wcat_ref[...], preferred_element_type=jnp.float32)   # (N, H*Fo)

    # ---- attention coefficients for all heads in two small dots ----
    # f_col[n, h] = a1_h . h_h[n]   ;   f_row[h, n] = a2_h . h_h[n]
    f_col = jax.lax.dot_general(h_all, a1_ref[...], (((1,), (1,)), ((), ())),
                                preferred_element_type=jnp.float32)          # (N, H)
    f_row = jax.lax.dot_general(a2_ref[...], h_all, (((1,), (1,)), ((), ())),
                                preferred_element_type=jnp.float32)          # (H, N)

    w_out = wout_ref[...]                                                    # (H*Fo, nclass)
    nclass = w_out.shape[1]
    h_out = jnp.zeros((x.shape[0], nclass), jnp.float32)

    # Per-head masked softmax + aggregation; the head-concat is folded directly
    # into the output projection:  h_cat @ W_out == sum_h elu(hp_h) @ W_out[h-block]
    for hh in range(nheads):                                                 # static unroll (H small)
        e = _leaky_relu(f_col[:, hh:hh + 1] + f_row[hh:hh + 1, :], alpha)    # (N, N)
        attn = _masked_softmax(e, mask)
        hp = jnp.dot(attn, h_all[:, hh * nhid:(hh + 1) * nhid],
                     preferred_element_type=jnp.float32)                     # (N, Fo)
        h_out = h_out + jnp.dot(_elu(hp), w_out[hh * nhid:(hh + 1) * nhid, :],
                                preferred_element_type=jnp.float32)          # (N, nclass)

    # ---- output attention layer (concat=False) ----
    a_out = aout_ref[...]                                                    # (2, nclass)
    g_col = jax.lax.dot_general(h_out, a_out, (((1,), (1,)), ((), ())),
                                preferred_element_type=jnp.float32)          # (N, 2)
    g_row = jax.lax.dot_general(a_out, h_out, (((1,), (1,)), ((), ())),
                                preferred_element_type=jnp.float32)          # (2, N)
    e = _leaky_relu(g_col[:, 0:1] + g_row[1:2, :], alpha)
    attn = _masked_softmax(e, mask)
    hp = jnp.dot(attn, h_out, preferred_element_type=jnp.float32)            # (N, nclass)
    hp = _elu(hp)                                                            # GAT.forward ELU
    # max over the node dim fused into the kernel
    o_ref[0] = jnp.max(hp, axis=0, keepdims=True)                            # (1, nclass)


def gat_forward(x, adj, params, *, alpha):
    """Full GAT forward: heads (concat) -> out layer -> ELU -> max over nodes."""
    B, N, F = x.shape
    H, _, Fo = params["W_heads"].shape
    nclass = params["W_out"].shape[1]

    # Parameter preprocessing (tiny, outside the kernel):
    # concat head weights on the output-feature axis, build block-diagonal "a"s.
    w_cat = jnp.transpose(params["W_heads"], (1, 0, 2)).reshape(F, H * Fo)   # (F, H*Fo)
    a1 = params["a_heads"][:, 0, :]                                          # (H, Fo)
    a2 = params["a_heads"][:, 1, :]                                          # (H, Fo)
    eye = jnp.eye(H, dtype=jnp.float32)
    a1_blk = (eye[:, :, None] * a1[None, :, :]).reshape(H, H * Fo)           # (H, H*Fo)
    a2_blk = (eye[:, :, None] * a2[None, :, :]).reshape(H, H * Fo)           # (H, H*Fo)

    kernel = functools.partial(gat_fused_kernel, alpha=alpha, nheads=H, nhid=Fo)
    out = pl.pallas_call(
        kernel,
        out_shape=jax.ShapeDtypeStruct((B, 1, nclass), jnp.float32),
        grid=(B,),
        in_specs=[
            pl.BlockSpec((1, N, F), lambda b: (b, 0, 0)),
            pl.BlockSpec((1, N, N), lambda b: (b, 0, 0)),
            pl.BlockSpec((F, H * Fo), lambda b: (0, 0)),
            pl.BlockSpec((H, H * Fo), lambda b: (0, 0)),
            pl.BlockSpec((H, H * Fo), lambda b: (0, 0)),
            pl.BlockSpec((H * Fo, nclass), lambda b: (0, 0)),
            pl.BlockSpec((2, nclass), lambda b: (0, 0)),
        ],
        out_specs=pl.BlockSpec((1, 1, nclass), lambda b: (b, 0, 0)),
        compiler_params=pltpu.CompilerParams(
            dimension_semantics=("parallel",)),   # batch split across TCs on v7x
    )(x, adj, w_cat, a1_blk, a2_blk, params["W_out"], params["a_out"])
    return jnp.squeeze(out[:, 0, :])   # matches .squeeze() in torch forward


# ----------------------------- pure-JAX reference -----------------------------
def _ref_layer(x, adj, W, a, alpha, concat):
    h = jnp.einsum("bnf,fo->bno", x, W)
    f1 = jnp.einsum("bno,o->bn", h, a[0])
    f2 = jnp.einsum("bno,o->bn", h, a[1])
    e = _leaky_relu(f1[:, :, None] + f2[:, None, :], alpha)
    e = jnp.where(adj > 0, e, NEG_BIG)
    attn = jax.nn.softmax(e, axis=-1)
    hp = jnp.einsum("bij,bjo->bio", attn, h)
    return _elu(hp) if concat else hp


def gat_reference(x, adj, params, *, alpha):
    H = params["W_heads"].shape[0]
    heads = [_ref_layer(x, adj, params["W_heads"][i], params["a_heads"][i],
                        alpha, True) for i in range(H)]
    h = jnp.concatenate(heads, axis=2)
    out = _elu(_ref_layer(h, adj, params["W_out"], params["a_out"], alpha, False))
    return jnp.squeeze(jnp.max(out, axis=1))


# ------------------------------------ main ------------------------------------
def _xavier(key, shape, gain=1.414):
    fan_in, fan_out = shape[-2], shape[-1]
    bound = gain * (6.0 / (fan_in + fan_out)) ** 0.5
    return jax.random.uniform(key, shape, jnp.float32, -bound, bound)


if __name__ == "__main__":
    # Module hyperparams (small, consistent with GAT.__init__)
    nfeat, nhid, nclass, nheads = 8, 8, 4, 2
    alpha, dropout = 0.2, 0.6        # dropout unused (inference)
    B, N = 2, 16

    key = jax.random.PRNGKey(0)
    k_x, k_adj, k_w1, k_a1, k_w2, k_a2 = jax.random.split(key, 6)

    x = jax.random.normal(k_x, (B, N, nfeat), jnp.float32)
    adj = (jax.random.bernoulli(k_adj, 0.4, (B, N, N))).astype(jnp.float32)
    adj = jnp.maximum(adj, jnp.eye(N, dtype=jnp.float32)[None])   # self loops

    params = {
        # heads stacked on a leading axis; a stored as (2, Fo): [a1 ; a2]
        "W_heads": _xavier(k_w1, (nheads, nfeat, nhid)),
        "a_heads": _xavier(k_a1, (nheads, 2, nhid)),
        "W_out":   _xavier(k_w2, (nhid * nheads, nclass)),
        "a_out":   _xavier(k_a2, (2, nclass)),
    }

    out = jax.block_until_ready(gat_forward(x, adj, params, alpha=alpha))
    ref = jax.block_until_ready(gat_reference(x, adj, params, alpha=alpha))

    assert out.shape == (B, nclass), out.shape
    assert jnp.allclose(out, ref, rtol=1e-5, atol=1e-5), (out, ref)
    print("KERNEL_OK")
</pallas_src>

<mosaic_0001>
module attributes {stable_mosaic.version = 11 : i64} {
  func.func @gat_fused_kernel(%arg0: i32, %arg1: memref<1x16x8xf32, #tpu.memory_space<vmem>>, %arg2: memref<1x16x16xf32, #tpu.memory_space<vmem>>, %arg3: memref<8x16xf32, #tpu.memory_space<vmem>>, %arg4: memref<2x16xf32, #tpu.memory_space<vmem>>, %arg5: memref<2x16xf32, #tpu.memory_space<vmem>>, %arg6: memref<16x4xf32, #tpu.memory_space<vmem>>, %arg7: memref<2x4xf32, #tpu.memory_space<vmem>>, %arg8: memref<1x1x4xf32, #tpu.memory_space<vmem>>) attributes {dimension_semantics = [#tpu.dimension_semantics<parallel>], iteration_bounds = array<i64: 2>, scalar_prefetch = 0 : i64, scratch_operands = 0 : i64, tpu.core_type = #tpu.core_type<tc>, window_params = [{transform_indices = @transform_0, window_bounds = array<i64: 1, 16, 8>}, {transform_indices = @transform_1, window_bounds = array<i64: 1, 16, 16>}, {pipeline_mode = #tpu.pipeline_mode<synchronous>, transform_indices = @transform_2, window_bounds = array<i64: 8, 16>}, {pipeline_mode = #tpu.pipeline_mode<synchronous>, transform_indices = @transform_3, window_bounds = array<i64: 2, 16>}, {pipeline_mode = #tpu.pipeline_mode<synchronous>, transform_indices = @transform_4, window_bounds = array<i64: 2, 16>}, {pipeline_mode = #tpu.pipeline_mode<synchronous>, transform_indices = @transform_5, window_bounds = array<i64: 16, 4>}, {pipeline_mode = #tpu.pipeline_mode<synchronous>, transform_indices = @transform_6, window_bounds = array<i64: 2, 4>}, {transform_indices = @transform_7, window_bounds = array<i64: 1, 1, 4>}]} {
    %c0 = arith.constant 0 : index
    %c0_0 = arith.constant 0 : index
    %c0_1 = arith.constant 0 : index
    %0 = vector.load %arg1[%c0, %c0_0, %c0_1] : memref<1x16x8xf32, #tpu.memory_space<vmem>>, vector<1x16x8xf32>
    %1 = vector.shape_cast %0 : vector<1x16x8xf32> to vector<16x8xf32>
    %c0_2 = arith.constant 0 : index
    %c0_3 = arith.constant 0 : index
    %c0_4 = arith.constant 0 : index
    %2 = vector.load %arg2[%c0_2, %c0_3, %c0_4] : memref<1x16x16xf32, #tpu.memory_space<vmem>>, vector<1x16x16xf32>
    %3 = vector.shape_cast %2 : vector<1x16x16xf32> to vector<16x16xf32>
    %cst = arith.constant 0.000000e+00 : f32
    %4 = vector.broadcast %cst : f32 to vector<16x16xf32>
    %5 = arith.cmpf ogt, %3, %4 : vector<16x16xf32>
    %c0_5 = arith.constant 0 : index
    %c0_6 = arith.constant 0 : index
    %6 = vector.load %arg3[%c0_5, %c0_6] : memref<8x16xf32, #tpu.memory_space<vmem>>, vector<8x16xf32>
    %cst_7 = arith.constant dense<0.000000e+00> : vector<16x16xf32>
    %7 = tpu.matmul %1, %6, %cst_7 {dimension_numbers = #tpu.dot_dimension_numbers<[1], [0], [0], [1], [0, 0, 1, 1], [], []>} : vector<16x8xf32>, vector<8x16xf32>, vector<16x16xf32> -> vector<16x16xf32>
    %c0_8 = arith.constant 0 : index
    %c0_9 = arith.constant 0 : index
    %8 = vector.load %arg4[%c0_8, %c0_9] : memref<2x16xf32, #tpu.memory_space<vmem>>, vector<2x16xf32>
    %cst_10 = arith.constant dense<0.000000e+00> : vector<16x2xf32>
    %9 = tpu.matmul %7, %8, %cst_10 {dimension_numbers = #tpu.dot_dimension_numbers<[1], [1], [0], [0], [0, 0, 1, 0], [], []>} : vector<16x16xf32>, vector<2x16xf32>, vector<16x2xf32> -> vector<16x2xf32>
    %c0_11 = arith.constant 0 : index
    %c0_12 = arith.constant 0 : index
    %10 = vector.load %arg5[%c0_11, %c0_12] : memref<2x16xf32, #tpu.memory_space<vmem>>, vector<2x16xf32>
    %cst_13 = arith.constant dense<0.000000e+00> : vector<2x16xf32>
    %11 = tpu.matmul %10, %7, %cst_13 {dimension_numbers = #tpu.dot_dimension_numbers<[1], [1], [0], [0], [0, 0, 1, 0], [], []>} : vector<2x16xf32>, vector<16x16xf32>, vector<2x16xf32> -> vector<2x16xf32>
    %c0_14 = arith.constant 0 : index
    %c0_15 = arith.constant 0 : index
    %12 = vector.load %arg6[%c0_14, %c0_15] : memref<16x4xf32, #tpu.memory_space<vmem>>, vector<16x4xf32>
    %cst_16 = arith.constant 0.000000e+00 : f32
    %13 = vector.broadcast %cst_16 : f32 to vector<16x4xf32>
    %14 = vector.extract_strided_slice %9 {offsets = [0, 0], sizes = [16, 1], strides = [1, 1]} : vector<16x2xf32> to vector<16x1xf32>
    %15 = vector.extract_strided_slice %11 {offsets = [0, 0], sizes = [1, 16], strides = [1, 1]} : vector<2x16xf32> to vector<1x16xf32>
    %16 = vector.broadcast %14 : vector<16x1xf32> to vector<16x16xf32>
    %17 = vector.broadcast %15 : vector<1x16xf32> to vector<16x16xf32>
    %18 = arith.addf %16, %17 : vector<16x16xf32>
    %cst_17 = arith.constant 0.000000e+00 : f32
    %19 = vector.broadcast %cst_17 : f32 to vector<16x16xf32>
    %20 = arith.cmpf ogt, %18, %19 : vector<16x16xf32>
    %cst_18 = arith.constant 2.000000e-01 : f32
    %21 = vector.broadcast %cst_18 : f32 to vector<16x16xf32>
    %22 = arith.mulf %21, %18 : vector<16x16xf32>
    %23 = arith.select %20, %18, %22 : vector<16x16xi1>, vector<16x16xf32>
    %cst_19 = arith.constant -9.000000e+15 : f32
    %24 = vector.broadcast %cst_19 : f32 to vector<16x16xf32>
    %25 = arith.select %5, %23, %24 : vector<16x16xi1>, vector<16x16xf32>
    %cst_20 = arith.constant dense<0xFF800000> : vector<16xf32>
    %26 = vector.multi_reduction <maximumf>, %25, %cst_20 [1] : vector<16x16xf32> to vector<16xf32>
    %27 = vector.shape_cast %26 : vector<16xf32> to vector<16x1xf32>
    %28 = vector.broadcast %27 : vector<16x1xf32> to vector<16x16xf32>
    %29 = arith.subf %25, %28 : vector<16x16xf32>
    %30 = math.exp %29 : vector<16x16xf32>
    %cst_21 = arith.constant dense<0.000000e+00> : vector<16xf32>
    %31 = vector.multi_reduction <add>, %30, %cst_21 [1] : vector<16x16xf32> to vector<16xf32>
    %32 = vector.shape_cast %31 : vector<16xf32> to vector<16x1xf32>
    %33 = tpu.reciprocal %32 : vector<16x1xf32> -> vector<16x1xf32>
    %34 = vector.broadcast %33 : vector<16x1xf32> to vector<16x16xf32>
    %35 = arith.mulf %30, %34 : vector<16x16xf32>
    %36 = vector.extract_strided_slice %7 {offsets = [0, 0], sizes = [16, 8], strides = [1, 1]} : vector<16x16xf32> to vector<16x8xf32>
    %cst_22 = arith.constant dense<0.000000e+00> : vector<16x8xf32>
    %37 = tpu.matmul %35, %36, %cst_22 {dimension_numbers = #tpu.dot_dimension_numbers<[1], [0], [0], [1], [0, 0, 1, 1], [], []>} : vector<16x16xf32>, vector<16x8xf32>, vector<16x8xf32> -> vector<16x8xf32>
    %cst_23 = arith.constant 0.000000e+00 : f32
    %38 = vector.broadcast %cst_23 : f32 to vector<16x8xf32>
    %39 = arith.cmpf ogt, %37, %38 : vector<16x8xf32>
    %40 = math.exp %37 : vector<16x8xf32>
    %cst_24 = arith.constant 1.000000e+00 : f32
    %41 = vector.broadcast %cst_24 : f32 to vector<16x8xf32>
    %42 = arith.subf %40, %41 : vector<16x8xf32>
    %43 = arith.select %39, %37, %42 : vector<16x8xi1>, vector<16x8xf32>
    %44 = vector.extract_strided_slice %12 {offsets = [0, 0], sizes = [8, 4], strides = [1, 1]} : vector<16x4xf32> to vector<8x4xf32>
    %cst_25 = arith.constant dense<0.000000e+00> : vector<16x4xf32>
    %45 = tpu.matmul %43, %44, %cst_25 {dimension_numbers = #tpu.dot_dimension_numbers<[1], [0], [0], [1], [0, 0, 1, 1], [], []>} : vector<16x8xf32>, vector<8x4xf32>, vector<16x4xf32> -> vector<16x4xf32>
    %46 = arith.addf %13, %45 : vector<16x4xf32>
    %47 = vector.extract_strided_slice %9 {offsets = [0, 1], sizes = [16, 1], strides = [1, 1]} : vector<16x2xf32> to vector<16x1xf32>
    %48 = vector.extract_strided_slice %11 {offsets = [1, 0], sizes = [1, 16], strides = [1, 1]} : vector<2x16xf32> to vector<1x16xf32>
    %49 = vector.broadcast %47 : vector<16x1xf32> to vector<16x16xf32>
    %50 = vector.broadcast %48 : vector<1x16xf32> to vector<16x16xf32>
    %51 = arith.addf %49, %50 : vector<16x16xf32>
    %cst_26 = arith.constant 0.000000e+00 : f32
    %52 = vector.broadcast %cst_26 : f32 to vector<16x16xf32>
    %53 = arith.cmpf ogt, %51, %52 : vector<16x16xf32>
    %cst_27 = arith.constant 2.000000e-01 : f32
    %54 = vector.broadcast %cst_27 : f32 to vector<16x16xf32>
    %55 = arith.mulf %54, %51 : vector<16x16xf32>
    %56 = arith.select %53, %51, %55 : vector<16x16xi1>, vector<16x16xf32>
    %cst_28 = arith.constant -9.000000e+15 : f32
    %57 = vector.broadcast %cst_28 : f32 to vector<16x16xf32>
    %58 = arith.select %5, %56, %57 : vector<16x16xi1>, vector<16x16xf32>
    %cst_29 = arith.constant dense<0xFF800000> : vector<16xf32>
    %59 = vector.multi_reduction <maximumf>, %58, %cst_29 [1] : vector<16x16xf32> to vector<16xf32>
    %60 = vector.shape_cast %59 : vector<16xf32> to vector<16x1xf32>
    %61 = vector.broadcast %60 : vector<16x1xf32> to vector<16x16xf32>
    %62 = arith.subf %58, %61 : vector<16x16xf32>
    %63 = math.exp %62 : vector<16x16xf32>
    %cst_30 = arith.constant dense<0.000000e+00> : vector<16xf32>
    %64 = vector.multi_reduction <add>, %63, %cst_30 [1] : vector<16x16xf32> to vector<16xf32>
    %65 = vector.shape_cast %64 : vector<16xf32> to vector<16x1xf32>
    %66 = tpu.reciprocal %65 : vector<16x1xf32> -> vector<16x1xf32>
    %67 = vector.broadcast %66 : vector<16x1xf32> to vector<16x16xf32>
    %68 = arith.mulf %63, %67 : vector<16x16xf32>
    %69 = vector.extract_strided_slice %7 {offsets = [0, 8], sizes = [16, 8], strides = [1, 1]} : vector<16x16xf32> to vector<16x8xf32>
    %cst_31 = arith.constant dense<0.000000e+00> : vector<16x8xf32>
    %70 = tpu.matmul %68, %69, %cst_31 {dimension_numbers = #tpu.dot_dimension_numbers<[1], [0], [0], [1], [0, 0, 1, 1], [], []>} : vector<16x16xf32>, vector<16x8xf32>, vector<16x8xf32> -> vector<16x8xf32>
    %cst_32 = arith.constant 0.000000e+00 : f32
    %71 = vector.broadcast %cst_32 : f32 to vector<16x8xf32>
    %72 = arith.cmpf ogt, %70, %71 : vector<16x8xf32>
    %73 = math.exp %70 : vector<16x8xf32>
    %cst_33 = arith.constant 1.000000e+00 : f32
    %74 = vector.broadcast %cst_33 : f32 to vector<16x8xf32>
    %75 = arith.subf %73, %74 : vector<16x8xf32>
    %76 = arith.select %72, %70, %75 : vector<16x8xi1>, vector<16x8xf32>
    %77 = vector.extract_strided_slice %12 {offsets = [8, 0], sizes = [8, 4], strides = [1, 1]} : vector<16x4xf32> to vector<8x4xf32>
    %cst_34 = arith.constant dense<0.000000e+00> : vector<16x4xf32>
    %78 = tpu.matmul %76, %77, %cst_34 {dimension_numbers = #tpu.dot_dimension_numbers<[1], [0], [0], [1], [0, 0, 1, 1], [], []>} : vector<16x8xf32>, vector<8x4xf32>, vector<16x4xf32> -> vector<16x4xf32>
    %79 = arith.addf %46, %78 : vector<16x4xf32>
    %c0_35 = arith.constant 0 : index
    %c0_36 = arith.constant 0 : index
    %80 = vector.load %arg7[%c0_35, %c0_36] : memref<2x4xf32, #tpu.memory_space<vmem>>, vector<2x4xf32>
    %cst_37 = arith.constant dense<0.000000e+00> : vector<16x2xf32>
    %81 = tpu.matmul %79, %80, %cst_37 {dimension_numbers = #tpu.dot_dimension_numbers<[1], [1], [0], [0], [0, 0, 1, 0], [], []>} : vector<16x4xf32>, vector<2x4xf32>, vector<16x2xf32> -> vector<16x2xf32>
    %cst_38 = arith.constant dense<0.000000e+00> : vector<2x16xf32>
    %82 = tpu.matmul %80, %79, %cst_38 {dimension_numbers = #tpu.dot_dimension_numbers<[1], [1], [0], [0], [0, 0, 1, 0], [], []>} : vector<2x4xf32>, vector<16x4xf32>, vector<2x16xf32> -> vector<2x16xf32>
    %83 = vector.extract_strided_slice %81 {offsets = [0, 0], sizes = [16, 1], strides = [1, 1]} : vector<16x2xf32> to vector<16x1xf32>
    %84 = vector.extract_strided_slice %82 {offsets = [1, 0], sizes = [1, 16], strides = [1, 1]} : vector<2x16xf32> to vector<1x16xf32>
    %85 = vector.broadcast %83 : vector<16x1xf32> to vector<16x16xf32>
    %86 = vector.broadcast %84 : vector<1x16xf32> to vector<16x16xf32>
    %87 = arith.addf %85, %86 : vector<16x16xf32>
    %cst_39 = arith.constant 0.000000e+00 : f32
    %88 = vector.broadcast %cst_39 : f32 to vector<16x16xf32>
    %89 = arith.cmpf ogt, %87, %88 : vector<16x16xf32>
    %cst_40 = arith.constant 2.000000e-01 : f32
    %90 = vector.broadcast %cst_40 : f32 to vector<16x16xf32>
    %91 = arith.mulf %90, %87 : vector<16x16xf32>
    %92 = arith.select %89, %87, %91 : vector<16x16xi1>, vector<16x16xf32>
    %cst_41 = arith.constant -9.000000e+15 : f32
    %93 = vector.broadcast %cst_41 : f32 to vector<16x16xf32>
    %94 = arith.select %5, %92, %93 : vector<16x16xi1>, vector<16x16xf32>
    %cst_42 = arith.constant dense<0xFF800000> : vector<16xf32>
    %95 = vector.multi_reduction <maximumf>, %94, %cst_42 [1] : vector<16x16xf32> to vector<16xf32>
    %96 = vector.shape_cast %95 : vector<16xf32> to vector<16x1xf32>
    %97 = vector.broadcast %96 : vector<16x1xf32> to vector<16x16xf32>
    %98 = arith.subf %94, %97 : vector<16x16xf32>
    %99 = math.exp %98 : vector<16x16xf32>
    %cst_43 = arith.constant dense<0.000000e+00> : vector<16xf32>
    %100 = vector.multi_reduction <add>, %99, %cst_43 [1] : vector<16x16xf32> to vector<16xf32>
    %101 = vector.shape_cast %100 : vector<16xf32> to vector<16x1xf32>
    %102 = tpu.reciprocal %101 : vector<16x1xf32> -> vector<16x1xf32>
    %103 = vector.broadcast %102 : vector<16x1xf32> to vector<16x16xf32>
    %104 = arith.mulf %99, %103 : vector<16x16xf32>
    %cst_44 = arith.constant dense<0.000000e+00> : vector<16x4xf32>
    %105 = tpu.matmul %104, %79, %cst_44 {dimension_numbers = #tpu.dot_dimension_numbers<[1], [0], [0], [1], [0, 0, 1, 1], [], []>} : vector<16x16xf32>, vector<16x4xf32>, vector<16x4xf32> -> vector<16x4xf32>
    %cst_45 = arith.constant 0.000000e+00 : f32
    %106 = vector.broadcast %cst_45 : f32 to vector<16x4xf32>
    %107 = arith.cmpf ogt, %105, %106 : vector<16x4xf32>
    %108 = math.exp %105 : vector<16x4xf32>
    %cst_46 = arith.constant 1.000000e+00 : f32
    %109 = vector.broadcast %cst_46 : f32 to vector<16x4xf32>
    %110 = arith.subf %108, %109 : vector<16x4xf32>
    %111 = arith.select %107, %105, %110 : vector<16x4xi1>, vector<16x4xf32>
    %cst_47 = arith.constant dense<0xFF800000> : vector<4xf32>
    %112 = vector.multi_reduction <maximumf>, %111, %cst_47 [0] : vector<16x4xf32> to vector<4xf32>
    %113 = vector.shape_cast %112 : vector<4xf32> to vector<1x4xf32>
    %c0_48 = arith.constant 0 : index
    %c0_49 = arith.constant 0 : index
    %c0_50 = arith.constant 0 : index
    %114 = vector.load %arg8[%c0_48, %c0_49, %c0_50] : memref<1x1x4xf32, #tpu.memory_space<vmem>>, vector<1x1x4xf32>
    %115 = vector.shape_cast %114 : vector<1x1x4xf32> to vector<1x4xf32>
    %116 = vector.shape_cast %113 : vector<1x4xf32> to vector<1x1x4xf32>
    tpu.vector_store %arg8[%c0_48, %c0_49, %c0_50], %116 {strides = array<i32>} : memref<1x1x4xf32, #tpu.memory_space<vmem>>, vector<1x1x4xf32>,
    return
  }
  func.func @transform_0(%arg0: i32) -> (i32, i32, i32) {
    %c0_i32 = arith.constant 0 : i32
    %c0_i32_0 = arith.constant 0 : i32
    %c0_i32_1 = arith.constant 0 : i32
    return %arg0, %c0_i32, %c0_i32_0 : i32, i32, i32
  }
  func.func @transform_1(%arg0: i32) -> (i32, i32, i32) {
    %c0_i32 = arith.constant 0 : i32
    %c0_i32_0 = arith.constant 0 : i32
    %c0_i32_1 = arith.constant 0 : i32
    return %arg0, %c0_i32, %c0_i32_0 : i32, i32, i32
  }
  func.func @transform_2(%arg0: i32) -> (i32, i32) {
    %c0_i32 = arith.constant 0 : i32
    %c0_i32_0 = arith.constant 0 : i32
    %c0_i32_1 = arith.constant 0 : i32
    return %c0_i32, %c0_i32_0 : i32, i32
  }
  func.func @transform_3(%arg0: i32) -> (i32, i32) {
    %c0_i32 = arith.constant 0 : i32
    %c0_i32_0 = arith.constant 0 : i32
    %c0_i32_1 = arith.constant 0 : i32
    return %c0_i32, %c0_i32_0 : i32, i32
  }
  func.func @transform_4(%arg0: i32) -> (i32, i32) {
    %c0_i32 = arith.constant 0 : i32
    %c0_i32_0 = arith.constant 0 : i32
    %c0_i32_1 = arith.constant 0 : i32
    return %c0_i32, %c0_i32_0 : i32, i32
  }
  func.func @transform_5(%arg0: i32) -> (i32, i32) {
    %c0_i32 = arith.constant 0 : i32
    %c0_i32_0 = arith.constant 0 : i32
    %c0_i32_1 = arith.constant 0 : i32
    return %c0_i32, %c0_i32_0 : i32, i32
  }
  func.func @transform_6(%arg0: i32) -> (i32, i32) {
    %c0_i32 = arith.constant 0 : i32
    %c0_i32_0 = arith.constant 0 : i32
    %c0_i32_1 = arith.constant 0 : i32
    return %c0_i32, %c0_i32_0 : i32, i32
  }
  func.func @transform_7(%arg0: i32) -> (i32, i32, i32) {
    %c0_i32 = arith.constant 0 : i32
    %c0_i32_0 = arith.constant 0 : i32
    %c0_i32_1 = arith.constant 0 : i32
    return %arg0, %c0_i32, %c0_i32_0 : i32, i32, i32
  }
}

</mosaic_0001>

<llo_original>
// kernel: tpu_custom_call.1
$region0: #{tpu_custom_call.1}
  #allocation0 [shape = 'u32[]', space=smem, size = 0x4, offset = 0x4, fixed_abs, tag = 'smem constant byte address 0x4 - core index']
  #allocation1 [shape = 'u32[72,128]{1,0:T(1,128)}', space=vmem, size = 0x9000, scoped, tag = 'internal scratch']
  %s0 = inlined_call_operand.vmem [shape: f32[2,16,8], index: 0, kind: input, shape index: {}]
  %s1 = inlined_call_operand.vmem [shape: f32[2,16,16], index: 1, kind: input, shape index: {}]
  %s2 = inlined_call_operand.vmem [shape: f32[8,16], index: 2, kind: input, shape index: {}]
  %s3 = inlined_call_operand.vmem [shape: f32[2,16], index: 3, kind: input, shape index: {}]
  %s4 = inlined_call_operand.vmem [shape: f32[2,16], index: 4, kind: input, shape index: {}]
  %s5 = inlined_call_operand.vmem [shape: f32[16,4], index: 5, kind: input, shape index: {}]
  %s6 = inlined_call_operand.vmem [shape: f32[2,4], index: 6, kind: input, shape index: {}]
  %s7 = inlined_call_operand.hbm [shape: f32[2,1,4], index: 7, kind: output, shape index: {}]
  %s8 = sld [smem:[#allocation0]]
  $region61: #{tpu_custom_call.1} parent=0
    _
  %s10 = ssub.s32 1, %s8
  %s11 = scalar_select 0, %s10, %s8
  $region1: #{tpu_custom_call.1} parent=0
    #allocation2 [shape = 'u8[1024]{0}', space=vmem, size = 0x400, scoped, tag = 'output window, operand 0']
    #allocation3 [shape = 's32[2]{0}', space=sflag, size = 0x8, scoped, tag = 'scoped memory for tpu_custom_call.1']
    %12 = vsyncpa [#allocation3], 0
    %s13 = scalar_lea.sflag [#allocation3], 1
    %14 = vsyncpa %s13, 0
    loop: start=0, step=1, limit=4
    $region2: #{tpu_custom_call.1} parent=1 // loop_pre_header
      _
    $region3: #{tpu_custom_call.1} parent=1 // loop_header
      %s16 = sphi 0, %s20
      %p17 = scmp.ge.s32.totalorder %s16, 4
      %s26 = sphi 0, %s28
      %s29 = sphi 0, %s26
      %s30 = sphi 0, %s29
      %s46 = sphi 0, %s30
      %s52 = sphi 0, %s54
      %s55 = sphi 0, %s52
      %s56 = sphi 0, %s55
      %s72 = sphi 0, %s56
      %s76 = sphi 0, %s76
      %s78 = sphi 0, %s76
      %s79 = sphi 0, %s78
      %s93 = sphi 0, %s79
      %s97 = sphi 0, %s97
      %s99 = sphi 0, %s97
      %s100 = sphi 0, %s99
      %s114 = sphi 0, %s100
      %s118 = sphi 0, %s118
      %s120 = sphi 0, %s118
      %s121 = sphi 0, %s120
      %s135 = sphi 0, %s121
      %s139 = sphi 0, %s139
      %s141 = sphi 0, %s139
      %s142 = sphi 0, %s141
      %s156 = sphi 0, %s142
      %s160 = sphi 0, %s160
      %s162 = sphi 0, %s160
      %s163 = sphi 0, %s162
      %s177 = sphi 0, %s163
      %s183 = sphi 0, %s185
      %s186 = sphi 0, %s183
      %s187 = sphi 0, %s186
      %s203 = sphi 0, %s187
    $region4: #{tpu_custom_call.1} parent=1 // loop_header_branch
      %19 = sbr.rel (%p17) target = $region8
    $region5: #{tpu_custom_call.1} parent=1 // loop_body
      %s21 = ssub.s32 %s16, 1
      %s22 = ssub.s32 %s16, 2
      %s23 = sadd.s32 %s16, 1
      %s24 = ssub.s32 %s16, %s23
      %p25 = scmp.eq.s32.totalorder %s24, 0
      %s27 = sadd.s32 %s26, 1
      %s28 = scalar_select %p25, %s26, %s27
      %p31 = pneg %p25
      %p32 = scmp.eq.s32.totalorder %s16, 1
      %p33 = por %p31, %p32
      %p34 = scmp.ne.s32.totalorder %s26, %s29
      %p35 = scmp.eq.s32.totalorder %s16, 0
      %p36 = por %p34, %p35
      %p37 = scmp.ne.s32.totalorder %s26, %s29
      %p38 = scmp.eq.s32.totalorder %s21, 1
      %p39 = por %p37, %p38
      %p40 = scmp.ne.s32.totalorder %s29, %s30
      %p41 = scmp.eq.s32.totalorder %s21, 0
      %p42 = por %p40, %p41
      %p43 = scmp.ne.s32.totalorder %s29, %s30
      %p44 = scmp.eq.s32.totalorder %s22, 1
      %p45 = por %p43, %p44
      %p47 = scmp.ne.s32.totalorder %s30, %s46
      %p48 = scmp.eq.s32.totalorder %s22, 0
      %p49 = por %p47, %p48
      %s50 = ssub.s32 %s16, %s23
      %p51 = scmp.eq.s32.totalorder %s50, 0
      %s53 = sadd.s32 %s52, 1
      %s54 = scalar_select %p51, %s52, %s53
      %p57 = pneg %p51
      %p58 = scmp.eq.s32.totalorder %s16, 1
      %p59 = por %p57, %p58
      %p60 = scmp.ne.s32.totalorder %s52, %s55
      %p61 = scmp.eq.s32.totalorder %s16, 0
      %p62 = por %p60, %p61
      %p63 = scmp.ne.s32.totalorder %s52, %s55
      %p64 = scmp.eq.s32.totalorder %s21, 1
      %p65 = por %p63, %p64
      %p66 = scmp.ne.s32.totalorder %s55, %s56
      %p67 = scmp.eq.s32.totalorder %s21, 0
      %p68 = por %p66, %p67
      %p69 = scmp.ne.s32.totalorder %s55, %s56
      %p70 = scmp.eq.s32.totalorder %s22, 1
      %p71 = por %p69, %p70
      %p73 = scmp.ne.s32.totalorder %s56, %s72
      %p74 = scmp.eq.s32.totalorder %s22, 0
      %p75 = por %p73, %p74
      %s77 = sadd.s32 %s76, 1
      %p80 = scmp.eq.s32.totalorder %s16, 1
      %p81 = scmp.ne.s32.totalorder %s76, %s78
      %p82 = scmp.eq.s32.totalorder %s16, 0
      %p83 = por %p81, %p82
      %p84 = scmp.ne.s32.totalorder %s76, %s78
      %p85 = scmp.eq.s32.totalorder %s21, 1
      %p86 = por %p84, %p85
      %p87 = scmp.ne.s32.totalorder %s78, %s79
      %p88 = scmp.eq.s32.totalorder %s21, 0
      %p89 = por %p87, %p88
      %p90 = scmp.ne.s32.totalorder %s78, %s79
      %p91 = scmp.eq.s32.totalorder %s22, 1
      %p92 = por %p90, %p91
      %p94 = scmp.ne.s32.totalorder %s79, %s93
      %p95 = scmp.eq.s32.totalorder %s22, 0
      %p96 = por %p94, %p95
      %s98 = sadd.s32 %s97, 1
      %p101 = scmp.eq.s32.totalorder %s16, 1
      %p102 = scmp.ne.s32.totalorder %s97, %s99
      %p103 = scmp.eq.s32.totalorder %s16, 0
      %p104 = por %p102, %p103
      %p105 = scmp.ne.s32.totalorder %s97, %s99
      %p106 = scmp.eq.s32.totalorder %s21, 1
      %p107 = por %p105, %p106
      %p108 = scmp.ne.s32.totalorder %s99, %s100
      %p109 = scmp.eq.s32.totalorder %s21, 0
      %p110 = por %p108, %p109
      %p111 = scmp.ne.s32.totalorder %s99, %s100
      %p112 = scmp.eq.s32.totalorder %s22, 1
      %p113 = por %p111, %p112
      %p115 = scmp.ne.s32.totalorder %s100, %s114
      %p116 = scmp.eq.s32.totalorder %s22, 0
      %p117 = por %p115, %p116
      %s119 = sadd.s32 %s118, 1
      %p122 = scmp.eq.s32.totalorder %s16, 1
      %p123 = scmp.ne.s32.totalorder %s118, %s120
      %p124 = scmp.eq.s32.totalorder %s16, 0
      %p125 = por %p123, %p124
      %p126 = scmp.ne.s32.totalorder %s118, %s120
      %p127 = scmp.eq.s32.totalorder %s21, 1
      %p128 = por %p126, %p127
      %p129 = scmp.ne.s32.totalorder %s120, %s121
      %p130 = scmp.eq.s32.totalorder %s21, 0
      %p131 = por %p129, %p130
      %p132 = scmp.ne.s32.totalorder %s120, %s121
      %p133 = scmp.eq.s32.totalorder %s22, 1
      %p134 = por %p132, %p133
      %p136 = scmp.ne.s32.totalorder %s121, %s135
      %p137 = scmp.eq.s32.totalorder %s22, 0
      %p138 = por %p136, %p137
      %s140 = sadd.s32 %s139, 1
      %p143 = scmp.eq.s32.totalorder %s16, 1
      %p144 = scmp.ne.s32.totalorder %s139, %s141
      %p145 = scmp.eq.s32.totalorder %s16, 0
      %p146 = por %p144, %p145
      %p147 = scmp.ne.s32.totalorder %s139, %s141
      %p148 = scmp.eq.s32.totalorder %s21, 1
      %p149 = por %p147, %p148
      %p150 = scmp.ne.s32.totalorder %s141, %s142
      %p151 = scmp.eq.s32.totalorder %s21, 0
      %p152 = por %p150, %p151
      %p153 = scmp.ne.s32.totalorder %s141, %s142
      %p154 = scmp.eq.s32.totalorder %s22, 1
      %p155 = por %p153, %p154
      %p157 = scmp.ne.s32.totalorder %s142, %s156
      %p158 = scmp.eq.s32.totalorder %s22, 0
      %p159 = por %p157, %p158
      %s161 = sadd.s32 %s160, 1
      %p164 = scmp.eq.s32.totalorder %s16, 1
      %p165 = scmp.ne.s32.totalorder %s160, %s162
      %p166 = scmp.eq.s32.totalorder %s16, 0
      %p167 = por %p165, %p166
      %p168 = scmp.ne.s32.totalorder %s160, %s162
      %p169 = scmp.eq.s32.totalorder %s21, 1
      %p170 = por %p168, %p169
      %p171 = scmp.ne.s32.totalorder %s162, %s163
      %p172 = scmp.eq.s32.totalorder %s21, 0
      %p173 = por %p171, %p172
      %p174 = scmp.ne.s32.totalorder %s162, %s163
      %p175 = scmp.eq.s32.totalorder %s22, 1
      %p176 = por %p174, %p175
      %p178 = scmp.ne.s32.totalorder %s163, %s177
      %p179 = scmp.eq.s32.totalorder %s22, 0
      %p180 = por %p178, %p179
      %s181 = ssub.s32 %s16, %s23
      %p182 = scmp.eq.s32.totalorder %s181, 0
      %s184 = sadd.s32 %s183, 1
      %s185 = scalar_select %p182, %s183, %s184
      %p188 = pneg %p182
      %p189 = scmp.eq.s32.totalorder %s16, 1
      %p190 = por %p188, %p189
      %p191 = scmp.ne.s32.totalorder %s183, %s186
      %p192 = scmp.eq.s32.totalorder %s16, 0
      %p193 = por %p191, %p192
      %p194 = scmp.ne.s32.totalorder %s183, %s186
      %p195 = scmp.eq.s32.totalorder %s21, 1
      %p196 = por %p194, %p195
      %p197 = scmp.ne.s32.totalorder %s186, %s187
      %p198 = scmp.eq.s32.totalorder %s21, 0
      %p199 = por %p197, %p198
      %p200 = scmp.ne.s32.totalorder %s186, %s187
      %p201 = scmp.eq.s32.totalorder %s22, 1
      %p202 = por %p200, %p201
      %p204 = scmp.ne.s32.totalorder %s187, %s203
      %p205 = scmp.eq.s32.totalorder %s22, 0
      %p206 = por %p204, %p205
      %p207 = scmp.le.s32.totalorder 1, %s16
      %p208 = scmp.lt.s32.totalorder %s16, 3
      %p209 = pnand %p207, %p208
      %p210 = pneg %p209
      // Predicated region
      $region9: #{tpu_custom_call.1} parent=5 // pred_check
        _
      $region10: #{tpu_custom_call.1} parent=5 // pred_check_branch
        %212 = sbr.rel (%p209) target = $region12
      $region11: #{tpu_custom_call.1} parent=5 // pred_region
        %s213 = ssub.s32 %s16, 1
        // Predicated region
        $region13: #{tpu_custom_call.1} parent=11 // pred_check
          %p214 = pneg %p89
        $region14: #{tpu_custom_call.1} parent=11 // pred_check_branch
          %216 = sbr.rel (%p214) target = $region16
        $region15: #{tpu_custom_call.1} parent=11 // pred_region
          _
        $region16: #{tpu_custom_call.1} parent=11 // pred_fallthru
          _
        // Predicated region
        $region17: #{tpu_custom_call.1} parent=11 // pred_check
          %p217 = pneg %p110
        $region18: #{tpu_custom_call.1} parent=11 // pred_check_branch
          %219 = sbr.rel (%p217) target = $region20
        $region19: #{tpu_custom_call.1} parent=11 // pred_region
          _
        $region20: #{tpu_custom_call.1} parent=11 // pred_fallthru
          _
        // Predicated region
        $region21: #{tpu_custom_call.1} parent=11 // pred_check
          %p220 = pneg %p131
        $region22: #{tpu_custom_call.1} parent=11 // pred_check_branch
          %222 = sbr.rel (%p220) target = $region24
        $region23: #{tpu_custom_call.1} parent=11 // pred_region
          _
        $region24: #{tpu_custom_call.1} parent=11 // pred_fallthru
          _
        // Predicated region
        $region25: #{tpu_custom_call.1} parent=11 // pred_check
          %p223 = pneg %p152
        $region26: #{tpu_custom_call.1} parent=11 // pred_check_branch
          %225 = sbr.rel (%p223) target = $region28
        $region27: #{tpu_custom_call.1} parent=11 // pred_region
          _
        $region28: #{tpu_custom_call.1} parent=11 // pred_fallthru
          _
        // Predicated region
        $region29: #{tpu_custom_call.1} parent=11 // pred_check
          %p226 = pneg %p173
        $region30: #{tpu_custom_call.1} parent=11 // pred_check_branch
          %228 = sbr.rel (%p226) target = $region32
        $region31: #{tpu_custom_call.1} parent=11 // pred_region
          _
        $region32: #{tpu_custom_call.1} parent=11 // pred_fallthru
          _
      $region12: #{tpu_custom_call.1} parent=5 // pred_fallthru
        _
      %p229 = scmp.lt.s32.totalorder %s16, 2
      // Predicated region
      $region33: #{tpu_custom_call.1} parent=5 // pred_check
        %p230 = pneg %p229
      $region34: #{tpu_custom_call.1} parent=5 // pred_check_branch
        %232 = sbr.rel (%p230) target = $region36
      $region35: #{tpu_custom_call.1} parent=5 // pred_region
        // Predicated region
        $region37: #{tpu_custom_call.1} parent=35 // pred_check
          %p233 = pneg %p36
        $region38: #{tpu_custom_call.1} parent=35 // pred_check_branch
          %235 = sbr.rel (%p233) target = $region40
        $region39: #{tpu_custom_call.1} parent=35 // pred_region
          %p236 = scmp.lt.s32.totalorder %s16, 1
          %s237 = scalar_select %p236, %s16, 1
          %s238 = smul.addr %s237, 2
          %s239 = smul.addr %s238, 8
          %s240 = scalar_lea.vmem %s0, %s239
        $region40: #{tpu_custom_call.1} parent=35 // pred_fallthru
          _
        // Predicated region
        $region41: #{tpu_custom_call.1} parent=35 // pred_check
          %p241 = pneg %p62
        $region42: #{tpu_custom_call.1} parent=35 // pred_check_branch
          %243 = sbr.rel (%p241) target = $region44
        $region43: #{tpu_custom_call.1} parent=35 // pred_region
          %p244 = scmp.lt.s32.totalorder %s16, 1
          %s245 = scalar_select %p244, %s16, 1
          %s246 = smul.addr %s245, 2
          %s247 = smul.addr %s246, 8
          %s248 = scalar_lea.vmem %s1, %s247
        $region44: #{tpu_custom_call.1} parent=35 // pred_fallthru
          _
      $region36: #{tpu_custom_call.1} parent=5 // pred_fallthru
        _
      %p249 = scmp.le.s32.totalorder 1, %s16
      %p250 = scmp.lt.s32.totalorder %s16, 3
      %p251 = pnand %p249, %p250
      %p252 = pneg %p251
      // Predicated region
      $region45: #{tpu_custom_call.1} parent=5 // pred_check
        _
      $region46: #{tpu_custom_call.1} parent=5 // pred_check_branch
        %254 = sbr.rel (%p251) target = $region48
      $region47: #{tpu_custom_call.1} parent=5 // pred_region
        %s255 = ssub.s32 %s16, 1
        %p256 = scmp.lt.s32.totalorder %s21, 1
        %s257 = scalar_select %p256, %s21, 1
        %s258 = smul.addr %s257, 2
        %s259 = smul.addr %s258, 8
        %s260 = scalar_lea.vmem %s0, %s259
        %p261 = pneg %p42
        %p262 = pneg %p39
        %p263 = scmp.lt.s32.totalorder %s21, 1
        %s264 = scalar_select %p263, %s21, 1
        %s265 = smul.addr %s264, 2
        %s266 = smul.addr %s265, 8
        %s267 = scalar_lea.vmem %s1, %s266
        %p268 = pneg %p68
        %p269 = pneg %p65
        %p270 = pneg %p89
        %p271 = pneg %p86
        %p272 = pneg %p110
        %p273 = pneg %p107
        %p274 = pneg %p131
        %p275 = pneg %p128
        %p276 = pneg %p152
        %p277 = pneg %p149
        %p278 = pneg %p173
        %p279 = pneg %p170
        %p280 = pneg %p199
        %p281 = pneg %p196
        %s282 = sand.u32 %s186, 1
        %s283 = scalar_lea.sflag [#allocation3], %s282
        %s284 = sand.u32 %s186, 1
        %s285 = scalar_lea.vmem [#allocation2], %s284
        %p286 = scmp.lt.s32.totalorder %s21, 1
        %s287 = scalar_select %p286, %s21, 1
        %s288 = smul.addr %s287, 2
        %s289 = smul.addr %s288, 8
        %s290 = scalar_lea.vmem %s0, %s289
        %p291 = scmp.lt.s32.totalorder %s21, 1
        %s292 = scalar_select %p291, %s21, 1
        %s293 = smul.addr %s292, 2
        %s294 = smul.addr %s293, 8
        %s295 = scalar_lea.vmem %s1, %s294
        %v296 = vld [vmem:[%s290] sm:$0xff]
        %v297 = vld [vmem:[%s290 + $0x8] sm:$0xff]
        %v298 = vld [vmem:[%s295] sm:$0xff]
        %v299 = vld [vmem:[%s295 + $0x8] sm:$0xff]
        %vm300 = vcmp.gt.f32.partialorder %v298, 0.0
        %vm301 = vcmp.gt.f32.partialorder %v299, 0.0
        %v302 = vld [vmem:[%s2] sm:$0xff]
        %vm303 = vcmask 64512
        %v305 = vsel %vm303, %v296, 0
        %v308 = vsel %vm303, %v297, 0
        %310 = vmatpush.msra.mxu0 0.0
        %311 = vmatpush.msra.mxu0 0.0
        %312 = vmatpush.msra.mxu0 0.0
        %313 = vmatpush.msra.mxu0 0.0
        %314 = vmatpush.msra.mxu0 0.0
        %315 = vmatpush.msra.mxu0 0.0
        %316 = vmatpush.msra.mxu0 0.0
        %317 = vmatpush.msra.mxu0 0.0
        %318 = vmatpush.msra.mxu0 0.0
        %319 = vmatpush.msra.mxu0 0.0
        %320 = vmatpush.msra.mxu0 0.0
        %321 = vmatpush.msra.mxu0 0.0
        %322 = vmatpush.msra.mxu0 0.0
        %323 = vmatpush.msra.mxu0 0.0
        %324 = vmatpush.msra.mxu0 0.0
        %325 = vmatpush.msra.mxu0 %v302
        %326 = vmatmul.f32.gmra.mxu0 %v305
        %v327 = vpop.f32.mrf.mxu0
        %v328 = vadd.f32 0.0, %v327
        %329 = vmatmul.f32.gmra.mxu0 %v308
        %v330 = vpop.f32.mrf.mxu0
        %v331 = vadd.f32 0.0, %v330
        %332 = vdwg.mxu0
        %v333 = vld [vmem:[%s3] sm:$0x3]
        %vm334 = vcmask 130048
        %v336 = vsel %vm334, %v328, 0
        %v339 = vsel %vm334, %v331, 0
        %v342 = vsel %vm334, %v333, 0
        %344 = vmatpush.xpose.msra.mxu0 0.0
        %345 = vmatpush.xpose.msra.mxu0 0.0
        %346 = vmatpush.xpose.msra.mxu0 0.0
        %347 = vmatpush.xpose.msra.mxu0 0.0
        %348 = vmatpush.xpose.msra.mxu0 0.0
        %349 = vmatpush.xpose.msra.mxu0 0.0
        %350 = vmatpush.xpose.msra.mxu0 0.0
        %351 = vmatpush.xpose.msra.mxu0 0.0
        %352 = vmatpush.xpose.msra.mxu0 0.0
        %353 = vmatpush.xpose.msra.mxu0 0.0
        %354 = vmatpush.xpose.msra.mxu0 0.0
        %355 = vmatpush.xpose.msra.mxu0 0.0
        %356 = vmatpush.xpose.msra.mxu0 0.0
        %357 = vmatpush.xpose.msra.mxu0 0.0
        %358 = vmatpush.xpose.msra.mxu0 0.0
        %359 = vmatpush.xpose.msra.mxu0 %v342
        %360 = vmatmul.f32.gmra.mxu0 %v336
        %v361 = vpop.f32.mrf.mxu0
        %v362 = vadd.f32 0.0, %v361
        %363 = vmatmul.f32.gmra.mxu0 %v339
        %v364 = vpop.f32.mrf.mxu0
        %v365 = vadd.f32 0.0, %v364
        %366 = vdwg.mxu0
        %v367 = vld [vmem:[%s4] sm:$0x3]
        %v369 = vsel %vm334, %v367, 0
        %371 = vmatpush.xpose.msra.mxu0 0.0
        %372 = vmatpush.xpose.msra.mxu0 0.0
        %373 = vmatpush.xpose.msra.mxu0 0.0
        %374 = vmatpush.xpose.msra.mxu0 0.0
        %375 = vmatpush.xpose.msra.mxu0 0.0
        %376 = vmatpush.xpose.msra.mxu0 0.0
        %377 = vmatpush.xpose.msra.mxu0 0.0
        %378 = vmatpush.xpose.msra.mxu0 0.0
        %379 = vmatpush.xpose.msra.mxu0 0.0
        %380 = vmatpush.xpose.msra.mxu0 0.0
        %381 = vmatpush.xpose.msra.mxu0 0.0
        %382 = vmatpush.xpose.msra.mxu0 0.0
        %383 = vmatpush.xpose.msra.mxu0 0.0
        %384 = vmatpush.xpose.msra.mxu0 0.0
        %385 = vmatpush.xpose.msra.mxu0 %v339
        %386 = vmatpush.xpose.msra.mxu0 %v336
        %387 = vmatmul.f32.gmra.mxu0 %v369
        %v388 = vpop.f32.mrf.mxu0
        %v389 = vadd.f32 0.0, %v388
        %390 = vdwg.mxu0
        %v391 = vld [vmem:[%s5] sm:$0xff]
        %v392 = vld [vmem:[%s5 + $0x8] sm:$0xff]
        %394 = vset.pattern.permute.xlu0 0
        %395 = vperm.xlu0 %394, %v362
        %v396 = vpop.permute.xlu0 %395
        %399 = vset.pattern.permute.xlu0 0
        %400 = vperm.xlu0 %399, %v365
        %v401 = vpop.permute.xlu0 %400
        %v403 = vperm.slane %v389, 0
        %v404 = vadd.f32 %v396, %v403
        %v405 = vadd.f32 %v401, %v403
        %vm406 = vcmp.gt.f32.partialorder %v404, 0.0
        %vm407 = vcmp.gt.f32.partialorder %v405, 0.0
        %v408 = vmul.f32 %v404, 0.2
        %v409 = vmul.f32 %v405, 0.2
        %v410 = vsel %vm406, %v404, %v408
        %v411 = vsel %vm407, %v405, %v409
        %v412 = vsel %vm300, %v410, -9e+15
        %v413 = vsel %vm301, %v411, -9e+15
        %v414 = vsel %vm334, %v412, -inf
        %415 = vmax.xlane.f32.xlu0 %v414
        %v416 = vpop.xlane.xlu0 %415
        %v417 = vsel %vm334, %v413, -inf
        %418 = vmax.xlane.f32.xlu0 %v417
        %v419 = vpop.xlane.xlu0 %418
        %v420 = vsub.f32 %v412, %v416
        %v421 = vsub.f32 %v413, %v419
        %v422 = vmul.f32 %v420, 1.442695
        %v423 = vpow.pop %v422
        %v424 = vmul.f32 %v421, 1.442695
        %v425 = vpow.pop %v424
        %v426 = vsel %vm334, %v423, 0.0
        %427 = vadd.xlane.f32.xlu0 %v426
        %v428 = vpop.xlane.xlu0 %427
        %v429 = vsel %vm334, %v425, 0.0
        %430 = vadd.xlane.f32.xlu0 %v429
        %v431 = vpop.xlane.xlu0 %430
        %v432 = vrcp.pop %v428
        %v433 = vmul.f32 %v428, %v432
        %v434 = vsub.f32 1.0, %v433
        %v435 = vmul.f32 %v432, %v434
        %v436 = vadd.f32 %v432, %v435
        %vm437 = vweird.f32 %v428
        %vm438 = vweird.f32 %v432
        %vm439 = vmor %vm437, %vm438
        %v440 = vsel %vm439, %v432, %v436
        %v441 = vand.u32 2147483647, %v428
        %vm442 = vcmp.eq.f32.partialorder %v441, 8.507059e+37
        %v443 = vand.u32 %v428, 2147483648
        %v444 = vor.u32 1.1754944e-38, %v443
        %v445 = vsel %vm442, %v444, %v440
        %v446 = vrcp.pop %v431
        %v447 = vmul.f32 %v431, %v446
        %v448 = vsub.f32 1.0, %v447
        %v449 = vmul.f32 %v446, %v448
        %v450 = vadd.f32 %v446, %v449
        %vm451 = vweird.f32 %v431
        %vm452 = vweird.f32 %v446
        %vm453 = vmor %vm451, %vm452
        %v454 = vsel %vm453, %v446, %v450
        %v455 = vand.u32 2147483647, %v431
        %vm456 = vcmp.eq.f32.partialorder %v455, 8.507059e+37
        %v457 = vand.u32 %v431, 2147483648
        %v458 = vor.u32 1.1754944e-38, %v457
        %v459 = vsel %vm456, %v458, %v454
        %v460 = vmul.f32 %v423, %v445
        %v461 = vmul.f32 %v425, %v459
        %v463 = vsel %vm334, %v460, 0
        %v466 = vsel %vm334, %v461, 0
        %468 = vmatpush.msra.mxu0 0.0
        %469 = vmatpush.msra.mxu0 0.0
        %470 = vmatpush.msra.mxu0 0.0
        %471 = vmatpush.msra.mxu0 0.0
        %472 = vmatpush.msra.mxu0 0.0
        %473 = vmatpush.msra.mxu0 0.0
        %474 = vmatpush.msra.mxu0 0.0
        %475 = vmatpush.msra.mxu0 0.0
        %476 = vmatpush.msra.mxu0 0.0
        %477 = vmatpush.msra.mxu0 0.0
        %478 = vmatpush.msra.mxu0 0.0
        %479 = vmatpush.msra.mxu0 0.0
        %480 = vmatpush.msra.mxu0 0.0
        %481 = vmatpush.msra.mxu0 0.0
        %482 = vmatpush.msra.mxu0 %v331
        %483 = vmatpush.msra.mxu0 %v328
        %484 = vmatmul.f32.gmra.mxu0 %v463
        %v485 = vpop.f32.mrf.mxu0
        %v486 = vadd.f32 0.0, %v485
        %487 = vmatmul.f32.gmra.mxu0 %v466
        %v488 = vpop.f32.mrf.mxu0
        %v489 = vadd.f32 0.0, %v488
        %490 = vdwg.mxu0
        %vm491 = vcmp.gt.f32.partialorder %v486, 0.0
        %vm492 = vcmp.gt.f32.partialorder %v489, 0.0
        %v493 = vmul.f32 %v486, 1.442695
        %v494 = vpow.pop %v493
        %v495 = vmul.f32 %v489, 1.442695
        %v496 = vpow.pop %v495
        %v497 = vsub.f32 %v494, 1.0
        %v498 = vsub.f32 %v496, 1.0
        %v499 = vsel %vm491, %v486, %v497
        %v500 = vsel %vm492, %v489, %v498
        %501 = vset.pattern.permute.xlu0 1
        %502 = vperm.xlu0 %501, %v362
        %v503 = vpop.permute.xlu0 %502
        %505 = vset.pattern.permute.xlu0 1
        %506 = vperm.xlu0 %505, %v365
        %v507 = vpop.permute.xlu0 %506
        %v509 = vperm.slane %v389, 1
        %v510 = vadd.f32 %v503, %v509
        %v511 = vadd.f32 %v507, %v509
        %vm512 = vcmp.gt.f32.partialorder %v510, 0.0
        %vm513 = vcmp.gt.f32.partialorder %v511, 0.0
        %v514 = vmul.f32 %v510, 0.2
        %v515 = vmul.f32 %v511, 0.2
        %v516 = vsel %vm512, %v510, %v514
        %v517 = vsel %vm513, %v511, %v515
        %v518 = vsel %vm300, %v516, -9e+15
        %v519 = vsel %vm301, %v517, -9e+15
        %v520 = vsel %vm334, %v518, -inf
        %521 = vmax.xlane.f32.xlu0 %v520
        %v522 = vpop.xlane.xlu0 %521
        %v523 = vsel %vm334, %v519, -inf
        %524 = vmax.xlane.f32.xlu0 %v523
        %v525 = vpop.xlane.xlu0 %524
        %v526 = vsub.f32 %v518, %v522
        %v527 = vsub.f32 %v519, %v525
        %v528 = vmul.f32 %v526, 1.442695
        %v529 = vpow.pop %v528
        %v530 = vmul.f32 %v527, 1.442695
        %v531 = vpow.pop %v530
        %v532 = vsel %vm334, %v529, 0.0
        %533 = vadd.xlane.f32.xlu0 %v532
        %v534 = vpop.xlane.xlu0 %533
        %v535 = vsel %vm334, %v531, 0.0
        %536 = vadd.xlane.f32.xlu0 %v535
        %v537 = vpop.xlane.xlu0 %536
        %v538 = vrcp.pop %v534
        %v539 = vmul.f32 %v534, %v538
        %v540 = vsub.f32 1.0, %v539
        %v541 = vmul.f32 %v538, %v540
        %v542 = vadd.f32 %v538, %v541
        %vm543 = vweird.f32 %v534
        %vm544 = vweird.f32 %v538
        %vm545 = vmor %vm543, %vm544
        %v546 = vsel %vm545, %v538, %v542
        %v547 = vand.u32 2147483647, %v534
        %vm548 = vcmp.eq.f32.partialorder %v547, 8.507059e+37
        %v549 = vand.u32 %v534, 2147483648
        %v550 = vor.u32 1.1754944e-38, %v549
        %v551 = vsel %vm548, %v550, %v546
        %v552 = vrcp.pop %v537
        %v553 = vmul.f32 %v537, %v552
        %v554 = vsub.f32 1.0, %v553
        %v555 = vmul.f32 %v552, %v554
        %v556 = vadd.f32 %v552, %v555
        %vm557 = vweird.f32 %v537
        %vm558 = vweird.f32 %v552
        %vm559 = vmor %vm557, %vm558
        %v560 = vsel %vm559, %v552, %v556
        %v561 = vand.u32 2147483647, %v537
        %vm562 = vcmp.eq.f32.partialorder %v561, 8.507059e+37
        %v563 = vand.u32 %v537, 2147483648
        %v564 = vor.u32 1.1754944e-38, %v563
        %v565 = vsel %vm562, %v564, %v560
        %v566 = vmul.f32 %v529, %v551
        %v567 = vmul.f32 %v531, %v565
        %568 = vrot.lane.b32.xlu0 %v328, 120
        %v569 = vpop.permute.xlu0 %568
        %570 = vrot.lane.b32.xlu0 %v331, 120
        %v571 = vpop.permute.xlu0 %570
        %v575 = vsel %vm334, %v566, 0
        %v578 = vsel %vm334, %v567, 0
        %580 = vmatpush.msra.mxu0 0.0
        %581 = vmatpush.msra.mxu0 0.0
        %582 = vmatpush.msra.mxu0 0.0
        %583 = vmatpush.msra.mxu0 0.0
        %584 = vmatpush.msra.mxu0 0.0
        %585 = vmatpush.msra.mxu0 0.0
        %586 = vmatpush.msra.mxu0 0.0
        %587 = vmatpush.msra.mxu0 0.0
        %588 = vmatpush.msra.mxu0 0.0
        %589 = vmatpush.msra.mxu0 0.0
        %590 = vmatpush.msra.mxu0 0.0
        %591 = vmatpush.msra.mxu0 0.0
        %592 = vmatpush.msra.mxu0 0.0
        %593 = vmatpush.msra.mxu0 0.0
        %594 = vmatpush.msra.mxu0 %v571
        %595 = vmatpush.msra.mxu0 %v569
        %596 = vmatmul.f32.gmra.mxu0 %v575
        %v597 = vpop.f32.mrf.mxu0
        %v598 = vadd.f32 0.0, %v597
        %599 = vmatmul.f32.gmra.mxu0 %v578
        %v600 = vpop.f32.mrf.mxu0
        %v601 = vadd.f32 0.0, %v600
        %602 = vdwg.mxu0
        %vm603 = vcmp.gt.f32.partialorder %v598, 0.0
        %vm604 = vcmp.gt.f32.partialorder %v601, 0.0
        %v605 = vmul.f32 %v598, 1.442695
        %v606 = vpow.pop %v605
        %v607 = vmul.f32 %v601, 1.442695
        %v608 = vpow.pop %v607
        %v609 = vsub.f32 %v606, 1.0
        %v610 = vsub.f32 %v608, 1.0
        %v611 = vsel %vm603, %v598, %v609
        %v612 = vsel %vm604, %v601, %v610
        %v614 = vsel %vm303, %v611, 0
        %v617 = vsel %vm303, %v612, 0
        %619 = vmatpush.msra.mxu0 0.0
        %620 = vmatpush.msra.mxu0 0.0
        %621 = vmatpush.msra.mxu0 0.0
        %622 = vmatpush.msra.mxu0 0.0
        %623 = vmatpush.msra.mxu0 0.0
        %624 = vmatpush.msra.mxu0 0.0
        %625 = vmatpush.msra.mxu0 0.0
        %626 = vmatpush.msra.mxu0 0.0
        %627 = vmatpush.msra.mxu0 0.0
        %628 = vmatpush.msra.mxu0 0.0
        %629 = vmatpush.msra.mxu0 0.0
        %630 = vmatpush.msra.mxu0 0.0
        %631 = vmatpush.msra.mxu0 0.0
        %632 = vmatpush.msra.mxu0 0.0
        %633 = vmatpush.msra.mxu0 0.0
        %634 = vmatpush.msra.mxu0 %v392
        %635 = vmatmul.f32.gmra.mxu0 %v614
        %v636 = vpop.f32.mrf.mxu0
        %v637 = vadd.f32 0.0, %v636
        %638 = vmatmul.f32.gmra.mxu0 %v617
        %v639 = vpop.f32.mrf.mxu0
        %v640 = vadd.f32 0.0, %v639
        %641 = vdwg.mxu0
        %v643 = vsel %vm303, %v499, 0
        %v646 = vsel %vm303, %v500, 0
        %648 = vmatpush.msra.mxu0 0.0
        %649 = vmatpush.msra.mxu0 0.0
        %650 = vmatpush.msra.mxu0 0.0
        %651 = vmatpush.msra.mxu0 0.0
        %652 = vmatpush.msra.mxu0 0.0
        %653 = vmatpush.msra.mxu0 0.0
        %654 = vmatpush.msra.mxu0 0.0
        %655 = vmatpush.msra.mxu0 0.0
        %656 = vmatpush.msra.mxu0 0.0
        %657 = vmatpush.msra.mxu0 0.0
        %658 = vmatpush.msra.mxu0 0.0
        %659 = vmatpush.msra.mxu0 0.0
        %660 = vmatpush.msra.mxu0 0.0
        %661 = vmatpush.msra.mxu0 0.0
        %662 = vmatpush.msra.mxu0 0.0
        %663 = vmatpush.msra.mxu0 %v391
        %664 = vmatmul.f32.gmra.mxu0 %v643
        %v665 = vpop.f32.mrf.mxu0
        %v666 = vadd.f32 %v637, %v665
        %667 = vmatmul.f32.gmra.mxu0 %v646
        %v668 = vpop.f32.mrf.mxu0
        %v669 = vadd.f32 %v640, %v668
        %670 = vdwg.mxu0
        %v671 = vld [vmem:[%s6] sm:$0x3]
        %vm672 = vcmask 31744
        %v674 = vsel %vm672, %v666, 0
        %v677 = vsel %vm672, %v669, 0
        %v680 = vsel %vm672, %v671, 0
        %682 = vmatpush.xpose.msra.mxu0 0.0
        %683 = vmatpush.xpose.msra.mxu0 0.0
        %684 = vmatpush.xpose.msra.mxu0 0.0
        %685 = vmatpush.xpose.msra.mxu0 0.0
        %686 = vmatpush.xpose.msra.mxu0 0.0
        %687 = vmatpush.xpose.msra.mxu0 0.0
        %688 = vmatpush.xpose.msra.mxu0 0.0
        %689 = vmatpush.xpose.msra.mxu0 0.0
        %690 = vmatpush.xpose.msra.mxu0 0.0
        %691 = vmatpush.xpose.msra.mxu0 0.0
        %692 = vmatpush.xpose.msra.mxu0 0.0
        %693 = vmatpush.xpose.msra.mxu0 0.0
        %694 = vmatpush.xpose.msra.mxu0 0.0
        %695 = vmatpush.xpose.msra.mxu0 0.0
        %696 = vmatpush.xpose.msra.mxu0 0.0
        %697 = vmatpush.xpose.msra.mxu0 %v680
        %698 = vmatmul.f32.gmra.mxu0 %v674
        %v699 = vpop.f32.mrf.mxu0
        %v700 = vadd.f32 0.0, %v699
        %701 = vmatmul.f32.gmra.mxu0 %v677
        %v702 = vpop.f32.mrf.mxu0
        %v703 = vadd.f32 0.0, %v702
        %704 = vdwg.mxu0
        %705 = vmatpush.xpose.msra.mxu0 0.0
        %706 = vmatpush.xpose.msra.mxu0 0.0
        %707 = vmatpush.xpose.msra.mxu0 0.0
        %708 = vmatpush.xpose.msra.mxu0 0.0
        %709 = vmatpush.xpose.msra.mxu0 0.0
        %710 = vmatpush.xpose.msra.mxu0 0.0
        %711 = vmatpush.xpose.msra.mxu0 0.0
        %712 = vmatpush.xpose.msra.mxu0 0.0
        %713 = vmatpush.xpose.msra.mxu0 0.0
        %714 = vmatpush.xpose.msra.mxu0 0.0
        %715 = vmatpush.xpose.msra.mxu0 0.0
        %716 = vmatpush.xpose.msra.mxu0 0.0
        %717 = vmatpush.xpose.msra.mxu0 0.0
        %718 = vmatpush.xpose.msra.mxu0 0.0
        %719 = vmatpush.xpose.msra.mxu0 %v677
        %720 = vmatpush.xpose.msra.mxu0 %v674
        %721 = vmatmul.f32.gmra.mxu0 %v680
        %v722 = vpop.f32.mrf.mxu0
        %v723 = vadd.f32 0.0, %v722
        %724 = vdwg.mxu0
        %726 = vset.pattern.permute.xlu0 0
        %727 = vperm.xlu0 %726, %v700
        %v728 = vpop.permute.xlu0 %727
        %731 = vset.pattern.permute.xlu0 0
        %732 = vperm.xlu0 %731, %v703
        %v733 = vpop.permute.xlu0 %732
        %v735 = vperm.slane %v723, 1
        %v736 = vadd.f32 %v728, %v735
        %v737 = vadd.f32 %v733, %v735
        %vm738 = vcmp.gt.f32.partialorder %v736, 0.0
        %vm739 = vcmp.gt.f32.partialorder %v737, 0.0
        %v740 = vmul.f32 %v736, 0.2
        %v741 = vmul.f32 %v737, 0.2
        %v742 = vsel %vm738, %v736, %v740
        %v743 = vsel %vm739, %v737, %v741
        %v744 = vsel %vm300, %v742, -9e+15
        %v745 = vsel %vm301, %v743, -9e+15
        %v746 = vsel %vm334, %v744, -inf
        %747 = vmax.xlane.f32.xlu0 %v746
        %v748 = vpop.xlane.xlu0 %747
        %v749 = vsel %vm334, %v745, -inf
        %750 = vmax.xlane.f32.xlu0 %v749
        %v751 = vpop.xlane.xlu0 %750
        %v752 = vsub.f32 %v744, %v748
        %v753 = vsub.f32 %v745, %v751
        %v754 = vmul.f32 %v752, 1.442695
        %v755 = vpow.pop %v754
        %v756 = vmul.f32 %v753, 1.442695
        %v757 = vpow.pop %v756
        %v758 = vsel %vm334, %v755, 0.0
        %759 = vadd.xlane.f32.xlu0 %v758
        %v760 = vpop.xlane.xlu0 %759
        %v761 = vsel %vm334, %v757, 0.0
        %762 = vadd.xlane.f32.xlu0 %v761
        %v763 = vpop.xlane.xlu0 %762
        %v764 = vrcp.pop %v760
        %v765 = vmul.f32 %v760, %v764
        %v766 = vsub.f32 1.0, %v765
        %v767 = vmul.f32 %v764, %v766
        %v768 = vadd.f32 %v764, %v767
        %vm769 = vweird.f32 %v760
        %vm770 = vweird.f32 %v764
        %vm771 = vmor %vm769, %vm770
        %v772 = vsel %vm771, %v764, %v768
        %v773 = vand.u32 2147483647, %v760
        %vm774 = vcmp.eq.f32.partialorder %v773, 8.507059e+37
        %v775 = vand.u32 %v760, 2147483648
        %v776 = vor.u32 1.1754944e-38, %v775
        %v777 = vsel %vm774, %v776, %v772
        %v778 = vrcp.pop %v763
        %v779 = vmul.f32 %v763, %v778
        %v780 = vsub.f32 1.0, %v779
        %v781 = vmul.f32 %v778, %v780
        %v782 = vadd.f32 %v778, %v781
        %vm783 = vweird.f32 %v763
        %vm784 = vweird.f32 %v778
        %vm785 = vmor %vm783, %vm784
        %v786 = vsel %vm785, %v778, %v782
        %v787 = vand.u32 2147483647, %v763
        %vm788 = vcmp.eq.f32.partialorder %v787, 8.507059e+37
        %v789 = vand.u32 %v763, 2147483648
        %v790 = vor.u32 1.1754944e-38, %v789
        %v791 = vsel %vm788, %v790, %v786
        %v792 = vmul.f32 %v755, %v777
        %v793 = vmul.f32 %v757, %v791
        %v795 = vsel %vm334, %v792, 0
        %v798 = vsel %vm334, %v793, 0
        %800 = vmatpush.msra.mxu0 0.0
        %801 = vmatpush.msra.mxu0 0.0
        %802 = vmatpush.msra.mxu0 0.0
        %803 = vmatpush.msra.mxu0 0.0
        %804 = vmatpush.msra.mxu0 0.0
        %805 = vmatpush.msra.mxu0 0.0
        %806 = vmatpush.msra.mxu0 0.0
        %807 = vmatpush.msra.mxu0 0.0
        %808 = vmatpush.msra.mxu0 0.0
        %809 = vmatpush.msra.mxu0 0.0
        %810 = vmatpush.msra.mxu0 0.0
        %811 = vmatpush.msra.mxu0 0.0
        %812 = vmatpush.msra.mxu0 0.0
        %813 = vmatpush.msra.mxu0 0.0
        %814 = vmatpush.msra.mxu0 %v669
        %815 = vmatpush.msra.mxu0 %v666
        %816 = vmatmul.f32.gmra.mxu0 %v795
        %v817 = vpop.f32.mrf.mxu0
        %v818 = vadd.f32 0.0, %v817
        %819 = vmatmul.f32.gmra.mxu0 %v798
        %v820 = vpop.f32.mrf.mxu0
        %v821 = vadd.f32 0.0, %v820
        %822 = vdwg.mxu0
        %vm823 = vcmp.gt.f32.partialorder %v818, 0.0
        %vm824 = vcmp.gt.f32.partialorder %v821, 0.0
        %v825 = vmul.f32 %v818, 1.442695
        %v826 = vpow.pop %v825
        %v827 = vmul.f32 %v821, 1.442695
        %v828 = vpow.pop %v827
        %v829 = vsub.f32 %v826, 1.0
        %v830 = vsub.f32 %v828, 1.0
        %v831 = vsel %vm823, %v818, %v829
        %v832 = vsel %vm824, %v821, %v830
        %v833 = vsel %vm672, %v831, -inf
        %v834 = vsel %vm672, %v832, -inf
        %v835 = vmax.f32 %v833, %v834
        %v836 = vrot.slane %v835, 4
        %v837 = vmax.f32 %v835, %v836
        %v838 = vrot.slane %v837, 2
        %v839 = vmax.f32 %v837, %v838
        %v840 = vrot.slane %v839, 1
        %v841 = vmax.f32 %v839, %v840
        %vm842 = vcmask 24576
        %843 = vst.msk [vmem:[%s285] sm:$0x1] %vm842, %v841
        %s844 = sand.u32 %s186, 1
        %s845 = scalar_lea.sflag [#allocation3], %s844
        %s846 = sand.u32 %s186, 1
        %s847 = scalar_lea.vmem [#allocation2], %s846
        // Predicated region
        $region49: #{tpu_custom_call.1} parent=47 // pred_check
          %p848 = pneg %p196
        $region50: #{tpu_custom_call.1} parent=47 // pred_check_branch
          %850 = sbr.rel (%p848) target = $region52
        $region51: #{tpu_custom_call.1} parent=47 // pred_region
          %852 = vsyncadd %s845, 0
          %s853 = scalar_lea.hbm %s7, %s21
          %s855 = sshll.u32 %s847, 4
          %s856 = int_to_ptr.vmem [resolvable:$true] %s855
          %s857 = sshll.u32 %s853, 4
          %s858 = int_to_ptr.hbm [resolvable:$true] %s857
          %860 = dma.vmem_to_hbm [thread:$0]  %s856, 16, %s858, %s845
        $region52: #{tpu_custom_call.1} parent=47 // pred_fallthru
          _
      $region48: #{tpu_custom_call.1} parent=5 // pred_fallthru
        _
      %p861 = scmp.le.s32.totalorder 2, %s16
      // Predicated region
      $region53: #{tpu_custom_call.1} parent=5 // pred_check
        %p862 = pneg %p861
      $region54: #{tpu_custom_call.1} parent=5 // pred_check_branch
        %864 = sbr.rel (%p862) target = $region56
      $region55: #{tpu_custom_call.1} parent=5 // pred_region
        %s865 = ssub.s32 %s16, 2
        // Predicated region
        $region57: #{tpu_custom_call.1} parent=55 // pred_check
          %p866 = pneg %p202
        $region58: #{tpu_custom_call.1} parent=55 // pred_check_branch
          %868 = sbr.rel (%p866) target = $region60
        $region59: #{tpu_custom_call.1} parent=55 // pred_region
          %s869 = sand.u32 %s187, 1
          %s870 = scalar_lea.sflag [#allocation3], %s869
          %s871 = sand.u32 %s187, 1
          %s872 = scalar_lea.vmem [#allocation2], %s871
          %874 = dma.done %s870, 16
        $region60: #{tpu_custom_call.1} parent=55 // pred_fallthru
          _
      $region56: #{tpu_custom_call.1} parent=5 // pred_fallthru
        _
    $region6: #{tpu_custom_call.1} parent=1 // loop_footer
      %s20 = sadd.s32 1, %s16
    $region7: #{tpu_custom_call.1} parent=1 // loop_footer_branch
      %15 = sbr.rel target = $region3
    $region8: #{tpu_custom_call.1} parent=1 // loop_exit
      _
    %875 = vsyncpa [#allocation3], 1
    %s876 = scalar_lea.sflag [#allocation3], 1
    %877 = vsyncpa %s876, 1

</llo_original>
